<compile_context>
chip_gen: v7x
topology: tpu7x:2x2x1
jax: 0.10.0
libtpu: 0.0.40
codegen_flags: <defaults>
</compile_context>

<pallas_src>
import jax
import jax.numpy as jnp
from jax.experimental import pallas as pl
from jax.experimental.pallas import tpu as pltpu

# ----------------------------- configuration --------------------------------
AGE_MIN = 0
AGE_MAX = 100
NUM_CLASSES = AGE_MAX - AGE_MIN + 1     # 101
CPAD = 128                              # classes padded to a full lane width
IN_CHANNELS = 3                         # RGB input
FEAT_DIM = 32                           # synthetic backbone feature dim
HIDDEN = 128                            # fc hidden width (as in the module)
BN_EPS = 1e-5


def _pick_spatial_tile(spatial, want):
    """Largest lane-aligned tile (multiple of 128) that divides the spatial size."""
    t = (min(want, spatial) // 128) * 128
    while t >= 128:
        if spatial % t == 0:
            return t
        t -= 128
    return spatial          # tiny images: a single block covering all of H*W


# --------------------------- kernel-layout params ----------------------------
def prepare_kernel_params(p):
    """Convert logical (PyTorch-like) params into kernel layouts (done once)."""
    f32 = jnp.float32
    kp = {
        # backbone stand-in: 1x1 conv weight, transposed to (F, C), bf16 for the MXU
        'wbbT': jnp.asarray(p['w_bb'], jnp.bfloat16).T,                     # (F, C)
        'bbb':  jnp.asarray(p['b_bb'], f32).reshape(FEAT_DIM, 1),           # (F, 1)
        # head params, row-oriented / lane-dense
        'wfc':      jnp.asarray(p['w_fc'], f32),                            # (F, HIDDEN)
        'bfc':      jnp.asarray(p['b_fc'], f32).reshape(1, HIDDEN),
        'bn_gamma': jnp.asarray(p['bn_gamma'], f32).reshape(1, HIDDEN),
        'bn_beta':  jnp.asarray(p['bn_beta'], f32).reshape(1, HIDDEN),
        'bn_mean':  jnp.asarray(p['bn_mean'], f32).reshape(1, HIDDEN),
        'bn_var':   jnp.asarray(p['bn_var'], f32).reshape(1, HIDDEN),
        # class dim padded 101 -> 128: zero weights, -1e30 bias, zero age values
        'whead': jnp.zeros((HIDDEN, CPAD), f32).at[:, :NUM_CLASSES].set(p['w_head']),
        'bhead': jnp.full((1, CPAD), -1e30, f32).at[0, :NUM_CLASSES].set(p['b_head']),
        'ages':  jnp.zeros((1, CPAD), f32).at[0, :NUM_CLASSES].set(p['age_values']),
    }
    return kp


# ------------------------------ wrapper / kernels -----------------------------
def fine_tuned_backbone_forward(x_nchw, kp, *, spatial_tile=4096):
    """x_nchw: (B, C, H, W) image batch; kp: prepared kernel params.  Returns (B,) ages."""
    B, C, H, W = x_nchw.shape
    S = H * W
    assert kp['wbbT'].shape == (FEAT_DIM, C)

    # NCHW -> (B, C, H*W): free reshape (no transpose); spatial sits on lanes.
    x = x_nchw.reshape(B, C, S)
    if x.dtype != jnp.bfloat16:        # bf16 read halves HBM traffic; accumulate in f32 below
        x = x.astype(jnp.bfloat16)

    st = _pick_spatial_tile(S, spatial_tile)
    n_chunks = S // st
    inv_s = 1.0 / float(S)             # divide by the TRUE H*W once, in the head kernel

    # ---- kernel 1: synthetic backbone (1x1 conv + ReLU) fused with global avg-pool sum ----
    def pool_kernel(x_ref, wbbT_ref, bbb_ref, psum_ref):
        s_idx = pl.program_id(1)

        @pl.when(s_idx == 0)
        def _init():
            psum_ref[...] = jnp.zeros_like(psum_ref)

        # Single 2-D MXU matmul per tile: (F, C) @ (C, S_tile), bf16 in / f32 accumulate.
        feat = jnp.dot(wbbT_ref[...], x_ref[...],
                       preferred_element_type=jnp.float32)               # (F, st)
        feat = jnp.maximum(feat + bbb_ref[...], 0.0)
        # Partial spatial sum for AdaptiveAvgPool2d(1); feature map never hits HBM.
        psum_ref[...] += jnp.sum(feat, axis=1, keepdims=True)            # (F, 1)

    const = lambda b, s: (0, 0)
    pooled_sum = pl.pallas_call(
        pool_kernel,
        out_shape=jax.ShapeDtypeStruct((B, FEAT_DIM, 1), jnp.float32),
        grid_spec=pltpu.PrefetchScalarGridSpec(
            num_scalar_prefetch=0,
            grid=(B, n_chunks),                    # batch parallel, spatial reduction last
            in_specs=[
                pl.BlockSpec((pl.Squeezed(), C, st), lambda b, s: (b, 0, s)),
                pl.BlockSpec((FEAT_DIM, C), const),
                pl.BlockSpec((FEAT_DIM, 1), const),
            ],
            out_specs=pl.BlockSpec((pl.Squeezed(), FEAT_DIM, 1), lambda b, s: (b, 0, 0)),
        ),
        compiler_params=pltpu.CompilerParams(
            dimension_semantics=("parallel", "arbitrary"),   # v7x: 2 TCs over batch
            vmem_limit_bytes=32 * 1024 * 1024,
        ),
    )(x, kp['wbbT'], kp['bbb'])

    # ---- kernel 2: fc -> BN -> ReLU -> age head -> softmax -> expected age (run once) ----
    def head_kernel(psum_ref, wfc_ref, bfc_ref, gamma_ref, beta_ref,
                    mean_ref, var_ref, whead_ref, bhead_ref, ages_ref, out_ref):
        pooled = psum_ref[...] * inv_s                                    # (B, F) mean over H*W
        h = jnp.dot(pooled, wfc_ref[...],
                    preferred_element_type=jnp.float32) + bfc_ref[...]    # (B, HIDDEN)
        inv_std = jax.lax.rsqrt(var_ref[...] + BN_EPS)
        h = (h - mean_ref[...]) * (inv_std * gamma_ref[...]) + beta_ref[...]   # BN (eval)
        h = jnp.maximum(h, 0.0)                                           # ReLU; Dropout = id (eval)
        logits = jnp.dot(h, whead_ref[...],
                         preferred_element_type=jnp.float32) + bhead_ref[...]  # (B, CPAD)
        m = jnp.max(logits, axis=1, keepdims=True)
        e = jnp.exp(logits - m)                       # padded classes: exp(-1e30 - m) -> 0
        num = jnp.sum(e * ages_ref[...], axis=1, keepdims=True)
        den = jnp.sum(e, axis=1, keepdims=True)
        out_ref[...] = num * pl.reciprocal(den, approx=False)             # (B, 1)

    vmem = pl.BlockSpec(memory_space=pltpu.MemorySpace.VMEM)
    head_args = (pooled_sum.reshape(B, FEAT_DIM), kp['wfc'], kp['bfc'],
                 kp['bn_gamma'], kp['bn_beta'], kp['bn_mean'], kp['bn_var'],
                 kp['whead'], kp['bhead'], kp['ages'])
    ages = pl.pallas_call(
        head_kernel,
        out_shape=jax.ShapeDtypeStruct((B, 1), jnp.float32),
        in_specs=[vmem] * len(head_args),
        out_specs=vmem,
    )(*head_args)
    return ages[:, 0]


# --------------------------- reference (plain JAX) ----------------------------
def reference_forward(x_nchw, p):
    B, C, H, W = x_nchw.shape
    x = x_nchw.astype(jnp.float32).reshape(B, C, H * W)                  # (B, C, S)
    feat = jnp.einsum('bcs,cf->bfs', x, p['w_bb']) + p['b_bb'][None, :, None]
    feat = jnp.maximum(feat, 0.0)
    pooled = jnp.mean(feat, axis=2)                                       # (B, F)
    h = pooled @ p['w_fc'] + p['b_fc']
    h = (h - p['bn_mean']) * jax.lax.rsqrt(p['bn_var'] + BN_EPS) * p['bn_gamma'] + p['bn_beta']
    h = jnp.maximum(h, 0.0)
    logits = h @ p['w_head'] + p['b_head']
    probs = jax.nn.softmax(logits, axis=1)
    return jnp.sum(probs * p['age_values'][None, :], axis=1)


# --------------------------------- params -------------------------------------
def make_params(key):
    ks = jax.random.split(key, 8)
    # keep the backbone weight exactly bf16-representable so kernel / reference agree tightly
    w_bb = (0.1 * jax.random.normal(ks[0], (IN_CHANNELS, FEAT_DIM), jnp.float32))
    w_bb = w_bb.astype(jnp.bfloat16).astype(jnp.float32)
    return {
        'w_bb': w_bb,
        'b_bb': 0.1 * jax.random.normal(ks[1], (FEAT_DIM,), jnp.float32),
        'w_fc': 0.1 * jax.random.normal(ks[2], (FEAT_DIM, HIDDEN), jnp.float32),
        'b_fc': 0.1 * jax.random.normal(ks[3], (HIDDEN,), jnp.float32),
        'bn_gamma': jnp.ones((HIDDEN,), jnp.float32),
        'bn_beta': jnp.zeros((HIDDEN,), jnp.float32),
        'bn_mean': 0.05 * jax.random.normal(ks[4], (HIDDEN,), jnp.float32),
        'bn_var': 1.0 + 0.1 * jax.random.uniform(ks[5], (HIDDEN,), jnp.float32),
        'w_head': 0.1 * jax.random.normal(ks[6], (HIDDEN, NUM_CLASSES), jnp.float32),
        'b_head': 0.1 * jax.random.normal(ks[7], (NUM_CLASSES,), jnp.float32),
        'age_values': jnp.arange(AGE_MIN, AGE_MAX + 1, dtype=jnp.float32),
    }


# --------------------------------- main ---------------------------------------
if __name__ == "__main__":
    key = jax.random.PRNGKey(0)
    pkey, xkey = jax.random.split(key)
    params = make_params(pkey)
    kparams = prepare_kernel_params(params)

    # Small NCHW image batch (stand-in for (B, 3, 224, 224) inputs); fed as bf16 so the
    # pooling kernel reads half the HBM bytes (accumulation stays f32).
    x = jax.random.normal(xkey, (2, IN_CHANNELS, 32, 32), jnp.float32).astype(jnp.bfloat16)

    # spatial_tile=256 exercises the gridded spatial accumulation (4 chunks per image).
    ages_pred = fine_tuned_backbone_forward(x, kparams, spatial_tile=256)
    ages_pred = jax.block_until_ready(ages_pred)

    ref = reference_forward(x, params)
    assert ages_pred.shape == (2,)
    assert jnp.allclose(ages_pred, ref, atol=0.25, rtol=1e-2), (ages_pred, ref)

    print("KERNEL_OK")
</pallas_src>

<mosaic_0001>
module attributes {stable_mosaic.version = 11 : i64} {
  func.func @pool_kernel(%arg0: i32, %arg1: i32, %arg2: memref<1x3x256xbf16, #tpu.memory_space<vmem>>, %arg3: memref<32x3xbf16, #tpu.memory_space<vmem>>, %arg4: memref<32x1xf32, #tpu.memory_space<vmem>>, %arg5: memref<1x32x1xf32, #tpu.memory_space<vmem>>) attributes {dimension_semantics = [#tpu.dimension_semantics<parallel>, #tpu.dimension_semantics<arbitrary>], iteration_bounds = array<i64: 2, 4>, scalar_prefetch = 0 : i64, scratch_operands = 0 : i64, tpu.core_type = #tpu.core_type<tc>, window_params = [{transform_indices = @transform_0, window_bounds = array<i64: 1, 3, 256>}, {pipeline_mode = #tpu.pipeline_mode<synchronous>, transform_indices = @transform_1, window_bounds = array<i64: 32, 3>}, {pipeline_mode = #tpu.pipeline_mode<synchronous>, transform_indices = @transform_2, window_bounds = array<i64: 32, 1>}, {transform_indices = @transform_3, window_bounds = array<i64: 1, 32, 1>}]} {
    %c0_i32 = arith.constant 0 : i32
    %0 = arith.cmpi eq, %arg1, %c0_i32 : i32
    %1 = arith.extui %0 : i1 to i32
    %c0_i32_0 = arith.constant 0 : i32
    %2 = arith.cmpi ne, %1, %c0_i32_0 : i32
    scf.if %2 {
      %cst_15 = arith.constant 0.000000e+00 : f32
      %20 = vector.broadcast %cst_15 : f32 to vector<32x1xf32>
      %c0_16 = arith.constant 0 : index
      %c0_17 = arith.constant 0 : index
      %c0_18 = arith.constant 0 : index
      %21 = vector.load %arg5[%c0_16, %c0_17, %c0_18] : memref<1x32x1xf32, #tpu.memory_space<vmem>>, vector<1x32x1xf32>
      %22 = vector.shape_cast %21 : vector<1x32x1xf32> to vector<32x1xf32>
      %23 = vector.shape_cast %20 : vector<32x1xf32> to vector<1x32x1xf32>
      tpu.vector_store %arg5[%c0_16, %c0_17, %c0_18], %23 {strides = array<i32>} : memref<1x32x1xf32, #tpu.memory_space<vmem>>, vector<1x32x1xf32>,
    } else {
    }
    %c0 = arith.constant 0 : index
    %c0_1 = arith.constant 0 : index
    %3 = vector.load %arg3[%c0, %c0_1] : memref<32x3xbf16, #tpu.memory_space<vmem>>, vector<32x3xbf16>
    %c0_2 = arith.constant 0 : index
    %c0_3 = arith.constant 0 : index
    %c0_4 = arith.constant 0 : index
    %4 = vector.load %arg2[%c0_2, %c0_3, %c0_4] : memref<1x3x256xbf16, #tpu.memory_space<vmem>>, vector<1x3x256xbf16>
    %5 = vector.shape_cast %4 : vector<1x3x256xbf16> to vector<3x256xbf16>
    %cst = arith.constant dense<0.000000e+00> : vector<32x256xf32>
    %6 = tpu.matmul %3, %5, %cst {dimension_numbers = #tpu.dot_dimension_numbers<[1], [0], [0], [1], [0, 0, 1, 1], [], []>} : vector<32x3xbf16>, vector<3x256xbf16>, vector<32x256xf32> -> vector<32x256xf32>
    %c0_5 = arith.constant 0 : index
    %c0_6 = arith.constant 0 : index
    %7 = vector.load %arg4[%c0_5, %c0_6] : memref<32x1xf32, #tpu.memory_space<vmem>>, vector<32x1xf32>
    %8 = vector.broadcast %7 : vector<32x1xf32> to vector<32x256xf32>
    %9 = arith.addf %6, %8 : vector<32x256xf32>
    %cst_7 = arith.constant 0.000000e+00 : f32
    %10 = vector.broadcast %cst_7 : f32 to vector<32x256xf32>
    %11 = arith.maximumf %9, %10 : vector<32x256xf32>
    %c0_8 = arith.constant 0 : index
    %c0_9 = arith.constant 0 : index
    %c0_10 = arith.constant 0 : index
    %12 = vector.load %arg5[%c0_8, %c0_9, %c0_10] : memref<1x32x1xf32, #tpu.memory_space<vmem>>, vector<1x32x1xf32>
    %13 = vector.shape_cast %12 : vector<1x32x1xf32> to vector<32x1xf32>
    %cst_11 = arith.constant dense<0.000000e+00> : vector<32xf32>
    %14 = vector.multi_reduction <add>, %11, %cst_11 [1] : vector<32x256xf32> to vector<32xf32>
    %15 = vector.shape_cast %14 : vector<32xf32> to vector<32x1xf32>
    %16 = arith.addf %13, %15 : vector<32x1xf32>
    %c0_12 = arith.constant 0 : index
    %c0_13 = arith.constant 0 : index
    %c0_14 = arith.constant 0 : index
    %17 = vector.load %arg5[%c0_12, %c0_13, %c0_14] : memref<1x32x1xf32, #tpu.memory_space<vmem>>, vector<1x32x1xf32>
    %18 = vector.shape_cast %17 : vector<1x32x1xf32> to vector<32x1xf32>
    %19 = vector.shape_cast %16 : vector<32x1xf32> to vector<1x32x1xf32>
    tpu.vector_store %arg5[%c0_12, %c0_13, %c0_14], %19 {strides = array<i32>} : memref<1x32x1xf32, #tpu.memory_space<vmem>>, vector<1x32x1xf32>,
    return
  }
  func.func @transform_0(%arg0: i32, %arg1: i32) -> (i32, i32, i32) {
    %c0_i32 = arith.constant 0 : i32
    %c0_i32_0 = arith.constant 0 : i32
    return %arg0, %c0_i32, %arg1 : i32, i32, i32
  }
  func.func @transform_1(%arg0: i32, %arg1: i32) -> (i32, i32) {
    %c0_i32 = arith.constant 0 : i32
    %c0_i32_0 = arith.constant 0 : i32
    %c0_i32_1 = arith.constant 0 : i32
    return %c0_i32, %c0_i32_0 : i32, i32
  }
  func.func @transform_2(%arg0: i32, %arg1: i32) -> (i32, i32) {
    %c0_i32 = arith.constant 0 : i32
    %c0_i32_0 = arith.constant 0 : i32
    %c0_i32_1 = arith.constant 0 : i32
    return %c0_i32, %c0_i32_0 : i32, i32
  }
  func.func @transform_3(%arg0: i32, %arg1: i32) -> (i32, i32, i32) {
    %c0_i32 = arith.constant 0 : i32
    %c0_i32_0 = arith.constant 0 : i32
    %c0_i32_1 = arith.constant 0 : i32
    return %arg0, %c0_i32, %c0_i32_0 : i32, i32, i32
  }
}

</mosaic_0001>

<llo_original>
// kernel: tpu_custom_call.1
$region0: #{tpu_custom_call.1}
  #allocation0 [shape = 'u32[]', space=smem, size = 0x4, offset = 0x4, fixed_abs, tag = 'smem constant byte address 0x4 - core index']
  #allocation1 [shape = 'u32[144,128]{1,0:T(1,128)}', space=vmem, size = 0x12000, scoped, tag = 'internal scratch']
  %s0 = inlined_call_operand.vmem [shape: bf16[2,3,1024], index: 0, kind: input, shape index: {}]
  %s1 = inlined_call_operand.vmem [shape: bf16[32,3], index: 1, kind: input, shape index: {}]
  %s2 = inlined_call_operand.vmem [shape: f32[32,1], index: 2, kind: input, shape index: {}]
  %s3 = inlined_call_operand.vmem [shape: f32[2,32,1], index: 3, kind: output, shape index: {}]
  %s4 = sld [smem:[#allocation0]]
  $region49: #{tpu_custom_call.1} parent=0
    _
  %s6 = ssub.s32 1, %s4
  %s7 = scalar_select 0, %s6, %s4
  loop: start=0, step=1, limit=10
  $region2: #{tpu_custom_call.1} parent=0 // loop_pre_header
    _
  $region3: #{tpu_custom_call.1} parent=0 // loop_header
    %s9 = sphi 0, %s13
    %p10 = scmp.ge.s32.totalorder %s9, 10
    %s16 = sphi 0, %s28
    %s17 = sphi 0, %s24
    %s18 = sphi 0, %s16
    %s19 = sphi 0, %s17
    %s20 = sphi 0, %s18
    %s21 = sphi 0, %s19
    %s33 = sphi 0, %s35
    %s36 = sphi 0, %s33
    %s37 = sphi 0, %s36
    %s53 = sphi 0, %s37
    %s57 = sphi 0, %s57
    %s59 = sphi 0, %s57
    %s60 = sphi 0, %s59
    %s74 = sphi 0, %s60
    %s78 = sphi 0, %s78
    %s80 = sphi 0, %s78
    %s81 = sphi 0, %s80
    %s95 = sphi 0, %s81
    %s101 = sphi 0, %s103
    %s104 = sphi 0, %s101
    %s105 = sphi 0, %s104
    %s121 = sphi 0, %s105
  $region4: #{tpu_custom_call.1} parent=0 // loop_header_branch
    %12 = sbr.rel (%p10) target = $region8
  $region5: #{tpu_custom_call.1} parent=0 // loop_body
    %s14 = ssub.s32 %s9, 1
    %s15 = ssub.s32 %s9, 2
    %s22 = sadd.s32 1, %s17
    %p23 = scmp.ge.s32.totalorder %s22, 4
    %s24 = scalar_select %p23, 0, %s22
    %s25 = sadd.s32 1, %s16
    %s26 = scalar_select %p23, %s25, %s16
    %p27 = scmp.ge.s32.totalorder %s26, 2
    %s28 = scalar_select %p27, 0, %s26
    %s29 = ssub.s32 %s16, %s28
    %s30 = ssub.s32 %s17, %s24
    %s31 = sor.u32 %s29, %s30
    %p32 = scmp.eq.s32.totalorder %s31, 0
    %s34 = sadd.s32 %s33, 1
    %s35 = scalar_select %p32, %s33, %s34
    %p38 = pneg %p32
    %p39 = scmp.eq.s32.totalorder %s9, 7
    %p40 = por %p38, %p39
    %p41 = scmp.ne.s32.totalorder %s33, %s36
    %p42 = scmp.eq.s32.totalorder %s9, 0
    %p43 = por %p41, %p42
    %p44 = scmp.ne.s32.totalorder %s33, %s36
    %p45 = scmp.eq.s32.totalorder %s14, 7
    %p46 = por %p44, %p45
    %p47 = scmp.ne.s32.totalorder %s36, %s37
    %p48 = scmp.eq.s32.totalorder %s14, 0
    %p49 = por %p47, %p48
    %p50 = scmp.ne.s32.totalorder %s36, %s37
    %p51 = scmp.eq.s32.totalorder %s15, 7
    %p52 = por %p50, %p51
    %p54 = scmp.ne.s32.totalorder %s37, %s53
    %p55 = scmp.eq.s32.totalorder %s15, 0
    %p56 = por %p54, %p55
    %s58 = sadd.s32 %s57, 1
    %p61 = scmp.eq.s32.totalorder %s9, 7
    %p62 = scmp.ne.s32.totalorder %s57, %s59
    %p63 = scmp.eq.s32.totalorder %s9, 0
    %p64 = por %p62, %p63
    %p65 = scmp.ne.s32.totalorder %s57, %s59
    %p66 = scmp.eq.s32.totalorder %s14, 7
    %p67 = por %p65, %p66
    %p68 = scmp.ne.s32.totalorder %s59, %s60
    %p69 = scmp.eq.s32.totalorder %s14, 0
    %p70 = por %p68, %p69
    %p71 = scmp.ne.s32.totalorder %s59, %s60
    %p72 = scmp.eq.s32.totalorder %s15, 7
    %p73 = por %p71, %p72
    %p75 = scmp.ne.s32.totalorder %s60, %s74
    %p76 = scmp.eq.s32.totalorder %s15, 0
    %p77 = por %p75, %p76
    %s79 = sadd.s32 %s78, 1
    %p82 = scmp.eq.s32.totalorder %s9, 7
    %p83 = scmp.ne.s32.totalorder %s78, %s80
    %p84 = scmp.eq.s32.totalorder %s9, 0
    %p85 = por %p83, %p84
    %p86 = scmp.ne.s32.totalorder %s78, %s80
    %p87 = scmp.eq.s32.totalorder %s14, 7
    %p88 = por %p86, %p87
    %p89 = scmp.ne.s32.totalorder %s80, %s81
    %p90 = scmp.eq.s32.totalorder %s14, 0
    %p91 = por %p89, %p90
    %p92 = scmp.ne.s32.totalorder %s80, %s81
    %p93 = scmp.eq.s32.totalorder %s15, 7
    %p94 = por %p92, %p93
    %p96 = scmp.ne.s32.totalorder %s81, %s95
    %p97 = scmp.eq.s32.totalorder %s15, 0
    %p98 = por %p96, %p97
    %s99 = ssub.s32 %s16, %s28
    %p100 = scmp.eq.s32.totalorder %s99, 0
    %s102 = sadd.s32 %s101, 1
    %s103 = scalar_select %p100, %s101, %s102
    %p106 = pneg %p100
    %p107 = scmp.eq.s32.totalorder %s9, 7
    %p108 = por %p106, %p107
    %p109 = scmp.ne.s32.totalorder %s101, %s104
    %p110 = scmp.eq.s32.totalorder %s9, 0
    %p111 = por %p109, %p110
    %p112 = scmp.ne.s32.totalorder %s101, %s104
    %p113 = scmp.eq.s32.totalorder %s14, 7
    %p114 = por %p112, %p113
    %p115 = scmp.ne.s32.totalorder %s104, %s105
    %p116 = scmp.eq.s32.totalorder %s14, 0
    %p117 = por %p115, %p116
    %p118 = scmp.ne.s32.totalorder %s104, %s105
    %p119 = scmp.eq.s32.totalorder %s15, 7
    %p120 = por %p118, %p119
    %p122 = scmp.ne.s32.totalorder %s105, %s121
    %p123 = scmp.eq.s32.totalorder %s15, 0
    %p124 = por %p122, %p123
    %p125 = scmp.le.s32.totalorder 1, %s9
    %p126 = scmp.lt.s32.totalorder %s9, 9
    %p127 = pnand %p125, %p126
    %p128 = pneg %p127
    // Predicated region
    $region9: #{tpu_custom_call.1} parent=5 // pred_check
      _
    $region10: #{tpu_custom_call.1} parent=5 // pred_check_branch
      %130 = sbr.rel (%p127) target = $region12
    $region11: #{tpu_custom_call.1} parent=5 // pred_region
      %s131 = ssub.s32 %s9, 1
      // Predicated region
      $region13: #{tpu_custom_call.1} parent=11 // pred_check
        %p132 = pneg %p70
      $region14: #{tpu_custom_call.1} parent=11 // pred_check_branch
        %134 = sbr.rel (%p132) target = $region16
      $region15: #{tpu_custom_call.1} parent=11 // pred_region
        _
      $region16: #{tpu_custom_call.1} parent=11 // pred_fallthru
        _
      // Predicated region
      $region17: #{tpu_custom_call.1} parent=11 // pred_check
        %p135 = pneg %p91
      $region18: #{tpu_custom_call.1} parent=11 // pred_check_branch
        %137 = sbr.rel (%p135) target = $region20
      $region19: #{tpu_custom_call.1} parent=11 // pred_region
        _
      $region20: #{tpu_custom_call.1} parent=11 // pred_fallthru
        _
    $region12: #{tpu_custom_call.1} parent=5 // pred_fallthru
      _
    %p138 = scmp.lt.s32.totalorder %s9, 8
    // Predicated region
    $region21: #{tpu_custom_call.1} parent=5 // pred_check
      %p139 = pneg %p138
    $region22: #{tpu_custom_call.1} parent=5 // pred_check_branch
      %141 = sbr.rel (%p139) target = $region24
    $region23: #{tpu_custom_call.1} parent=5 // pred_region
      // Predicated region
      $region25: #{tpu_custom_call.1} parent=23 // pred_check
        %p142 = pneg %p43
      $region26: #{tpu_custom_call.1} parent=23 // pred_check_branch
        %144 = sbr.rel (%p142) target = $region28
      $region27: #{tpu_custom_call.1} parent=23 // pred_region
        %s145 = smul.u32 2, %s17
        %p146 = scmp.lt.s32.totalorder %s16, 1
        %s147 = scalar_select %p146, %s16, 1
        %p148 = scmp.lt.s32.totalorder %s145, 7
        %s149 = scalar_select %p148, %s145, 7
        %s150 = smul.addr %s147, 8
        %s151 = sadd.s32 %s149, %s150
        %s152 = smul.addr %s151, 2
        %s153 = scalar_lea.vmem %s0, %s152
        %s154 = smul.u32 2, %s17
      $region28: #{tpu_custom_call.1} parent=23 // pred_fallthru
        _
    $region24: #{tpu_custom_call.1} parent=5 // pred_fallthru
      _
    %p155 = scmp.le.s32.totalorder 1, %s9
    %p156 = scmp.lt.s32.totalorder %s9, 9
    %p157 = pnand %p155, %p156
    %p158 = pneg %p157
    // Predicated region
    $region29: #{tpu_custom_call.1} parent=5 // pred_check
      _
    $region30: #{tpu_custom_call.1} parent=5 // pred_check_branch
      %160 = sbr.rel (%p157) target = $region32
    $region31: #{tpu_custom_call.1} parent=5 // pred_region
      %s161 = ssub.s32 %s9, 1
      %s162 = smul.u32 2, %s19
      %p163 = scmp.lt.s32.totalorder %s18, 1
      %s164 = scalar_select %p163, %s18, 1
      %p165 = scmp.lt.s32.totalorder %s162, 7
      %s166 = scalar_select %p165, %s162, 7
      %s167 = smul.addr %s164, 8
      %s168 = sadd.s32 %s166, %s167
      %s169 = smul.addr %s168, 2
      %s170 = scalar_lea.vmem %s0, %s169
      %p171 = pneg %p49
      %p172 = pneg %p46
      %p173 = pneg %p70
      %p174 = pneg %p67
      %p175 = pneg %p91
      %p176 = pneg %p88
      %p177 = pneg %p117
      %p178 = pneg %p114
      %p179 = scmp.lt.s32.totalorder %s18, 1
      %s180 = scalar_select %p179, %s18, 1
      %s181 = smul.addr %s180, 4
      %s182 = smul.addr %s181, 8
      %s183 = scalar_lea.vmem %s3, %s182
      %s184 = smul.u32 2, %s19
      %p185 = scmp.lt.s32.totalorder %s18, 1
      %s186 = scalar_select %p185, %s18, 1
      %p187 = scmp.lt.s32.totalorder %s184, 7
      %s188 = scalar_select %p187, %s184, 7
      %s189 = smul.addr %s186, 8
      %s190 = sadd.s32 %s188, %s189
      %s191 = smul.addr %s190, 2
      %s192 = scalar_lea.vmem %s0, %s191
      %s193 = smul.u32 2, %s19
      %p194 = scmp.lt.s32.totalorder %s18, 1
      %s195 = scalar_select %p194, %s18, 1
      %s196 = smul.addr %s195, 4
      %s197 = smul.addr %s196, 8
      %s198 = scalar_lea.vmem %s3, %s197
      %p200 = scmp.eq.s32.totalorder %s19, 0
      // Predicated region
      $region33: #{tpu_custom_call.1} parent=31 // pred_check
        %p201 = pneg %p200
      $region34: #{tpu_custom_call.1} parent=31 // pred_check_branch
        %203 = sbr.rel (%p201) target = $region36
      $region35: #{tpu_custom_call.1} parent=31 // pred_region
        %vm204 = vcmask 7168
        %205 = vst.msk [vmem:[%s198] sm:$0xff] %vm204, 0.0
        %206 = vst.msk [vmem:[%s198 + $0x8] sm:$0xff] %vm204, 0.0
        %207 = vst.msk [vmem:[%s198 + $0x10] sm:$0xff] %vm204, 0.0
        %208 = vst.msk [vmem:[%s198 + $0x18] sm:$0xff] %vm204, 0.0
      $region36: #{tpu_custom_call.1} parent=31 // pred_fallthru
        _
      %v209 = vld [vmem:[%s1] sm:$0xf]
      %v210 = vld [vmem:[%s1 + $0x4] sm:$0xf]
      %v211 = vld [vmem:[%s1 + $0x8] sm:$0xf]
      %v212 = vld [vmem:[%s1 + $0xc] sm:$0xf]
      %v213 = vld [vmem:[%s192] sm:$0xf]
      %v214 = vld [vmem:[%s2] sm:$0xff]
      %v215 = vld [vmem:[%s2 + $0x8] sm:$0xff]
      %v216 = vld [vmem:[%s2 + $0x10] sm:$0xff]
      %v217 = vld [vmem:[%s2 + $0x18] sm:$0xff]
      %219 = vset.pattern.permute.xlu0 0
      %220 = vperm.xlu0 %219, %v214
      %v221 = vpop.permute.xlu0 %220
      %224 = vset.pattern.permute.xlu0 0
      %225 = vperm.xlu0 %224, %v215
      %v226 = vpop.permute.xlu0 %225
      %229 = vset.pattern.permute.xlu0 0
      %230 = vperm.xlu0 %229, %v216
      %v231 = vpop.permute.xlu0 %230
      %234 = vset.pattern.permute.xlu0 0
      %235 = vperm.xlu0 %234, %v217
      %v236 = vpop.permute.xlu0 %235
      %v242 = vunpack.c.l.b16 %v209
      %v243 = vunpack.c.l.b16 %v210
      %v244 = vunpack.c.l.b16 %v211
      %v245 = vunpack.c.l.b16 %v212
      %v246 = vpack.c.b16 %v243, %v242
      %v247 = vpack.c.b16 %v245, %v244
      %v250 = vunpack.c.l.s4 1983009808
      %v251 = vunpack.c.0.s8 %v250
      %v252 = vlaneseq
      %v253 = vshrl.u32 %v252, 7
      %v254 = vsub.s32 %v251, %v253
      %v255 = vrot.slane %v213, %v254
      %v256 = vcombine.high %v255, %v255
      %vm257 = vcmask 23552
      %v259 = vsel %vm257, %v246, 0
      %v262 = vsel %vm257, %v247, 0
      %vm264 = vcmask 1040384
      %vm265 = vcmask 1041408
      %v266 = vsel %vm264, 4294967295, 65535
      %v267 = vsel %vm265, %v266, 0
      %v269 = vand.u32 %v255, %v267
      %v272 = vand.u32 %v256, %v267
      %274 = vmatprep.subr.bf16.mxu0 %v272
      %275 = vmatpush1.bf16.msra.mxu0 %v269
      %276 = vmatprep.subr.bf16.mxu0 0
      %277 = vmatpush1.bf16.msra.mxu0 0
      %278 = vmatprep.subr.bf16.mxu0 0
      %279 = vmatpush1.bf16.msra.mxu0 0
      %280 = vmatprep.subr.bf16.mxu0 0
      %281 = vmatpush1.bf16.msra.mxu0 0
      %282 = vmatprep.subr.bf16.mxu0 0
      %283 = vmatpush1.bf16.msra.mxu0 0
      %284 = vmatprep.subr.bf16.mxu0 0
      %285 = vmatpush1.bf16.msra.mxu0 0
      %286 = vmatprep.subr.bf16.mxu0 0
      %287 = vmatpush1.bf16.msra.mxu0 0
      %288 = vmatprep.subr.bf16.mxu0 0
      %289 = vmatpush1.bf16.msra.mxu0 0
      %290 = vmatprep.subr.bf16.mxu0 0
      %291 = vmatpush1.bf16.msra.mxu0 0
      %292 = vmatprep.subr.bf16.mxu0 0
      %293 = vmatpush1.bf16.msra.mxu0 0
      %294 = vmatprep.subr.bf16.mxu0 0
      %295 = vmatpush1.bf16.msra.mxu0 0
      %296 = vmatprep.subr.bf16.mxu0 0
      %297 = vmatpush1.bf16.msra.mxu0 0
      %298 = vmatprep.subr.bf16.mxu0 0
      %299 = vmatpush1.bf16.msra.mxu0 0
      %300 = vmatprep.subr.bf16.mxu0 0
      %301 = vmatpush1.bf16.msra.mxu0 0
      %302 = vmatprep.subr.bf16.mxu0 0
      %303 = vmatpush1.bf16.msra.mxu0 0
      %304 = vmatprep.subr.bf16.mxu0 0
      %305 = vmatpush1.bf16.msra.mxu0 0
      %306 = vmatprep.mubr.bf16.mxu0 0
      %307 = vmatmul.mubr.bf16.gmra.mrb[0].mxu0 %v259
      %v308 = vpop.f32.mrb[0].mxu0
      %v309 = vadd.f32 %v221, %v308
      %v310 = vpop.f32.mrb[0].mxu0
      %v311 = vadd.f32 %v221, %v310
      %v312 = vpop.f32.mrb[0].mxu0
      %v313 = vadd.f32 %v226, %v312
      %v314 = vpop.f32.mrb[0].mxu0
      %v315 = vadd.f32 %v226, %v314
      %316 = vmatprep.mubr.bf16.mxu0 0
      %317 = vmatmul.mubr.bf16.gmra.mrb[0].mxu0 %v262
      %v318 = vpop.f32.mrb[0].mxu0
      %v319 = vadd.f32 %v231, %v318
      %v320 = vpop.f32.mrb[0].mxu0
      %v321 = vadd.f32 %v231, %v320
      %v322 = vpop.f32.mrb[0].mxu0
      %v323 = vadd.f32 %v236, %v322
      %v324 = vpop.f32.mrb[0].mxu0
      %v325 = vadd.f32 %v236, %v324
      %326 = vdwg.mxu0
      %v327 = vmax.f32 %v309, 0.0
      %v328 = vmax.f32 %v311, 0.0
      %v329 = vmax.f32 %v313, 0.0
      %v330 = vmax.f32 %v315, 0.0
      %v331 = vmax.f32 %v319, 0.0
      %v332 = vmax.f32 %v321, 0.0
      %v333 = vmax.f32 %v323, 0.0
      %v334 = vmax.f32 %v325, 0.0
      %v335 = vld [vmem:[%s198] sm:$0xff]
      %v336 = vld [vmem:[%s198 + $0x8] sm:$0xff]
      %v337 = vld [vmem:[%s198 + $0x10] sm:$0xff]
      %v338 = vld [vmem:[%s198 + $0x18] sm:$0xff]
      %v339 = vadd.f32 %v327, %v328
      %340 = vadd.xlane.f32.xlu0 %v339
      %v341 = vpop.xlane.xlu0 %340
      %v342 = vadd.f32 %v329, %v330
      %343 = vadd.xlane.f32.xlu0 %v342
      %v344 = vpop.xlane.xlu0 %343
      %v345 = vadd.f32 %v331, %v332
      %346 = vadd.xlane.f32.xlu0 %v345
      %v347 = vpop.xlane.xlu0 %346
      %v348 = vadd.f32 %v333, %v334
      %349 = vadd.xlane.f32.xlu0 %v348
      %v350 = vpop.xlane.xlu0 %349
      %v351 = vadd.f32 %v335, %v341
      %v352 = vadd.f32 %v336, %v344
      %v353 = vadd.f32 %v337, %v347
      %v354 = vadd.f32 %v338, %v350
      %vm355 = vcmask 7168
      %356 = vst.msk [vmem:[%s198] sm:$0xff] %vm355, %v351
      %357 = vst.msk [vmem:[%s198 + $0x8] sm:$0xff] %vm355, %v352
      %358 = vst.msk [vmem:[%s198 + $0x10] sm:$0xff] %vm355, %v353
      %359 = vst.msk [vmem:[%s198 + $0x18] sm:$0xff] %vm355, %v354
      %p360 = scmp.lt.s32.totalorder %s18, 1
      %s361 = scalar_select %p360, %s18, 1
      %s362 = smul.addr %s361, 4
      %s363 = smul.addr %s362, 8
      %s364 = scalar_lea.vmem %s3, %s363
      // Predicated region
      $region37: #{tpu_custom_call.1} parent=31 // pred_check
        %p365 = pneg %p114
      $region38: #{tpu_custom_call.1} parent=31 // pred_check_branch
        %367 = sbr.rel (%p365) target = $region40
      $region39: #{tpu_custom_call.1} parent=31 // pred_region
        _
      $region40: #{tpu_custom_call.1} parent=31 // pred_fallthru
        _
    $region32: #{tpu_custom_call.1} parent=5 // pred_fallthru
      _
    %p368 = scmp.le.s32.totalorder 2, %s9
    // Predicated region
    $region41: #{tpu_custom_call.1} parent=5 // pred_check
      %p369 = pneg %p368
    $region42: #{tpu_custom_call.1} parent=5 // pred_check_branch
      %371 = sbr.rel (%p369) target = $region44
    $region43: #{tpu_custom_call.1} parent=5 // pred_region
      %s372 = ssub.s32 %s9, 2
      // Predicated region
      $region45: #{tpu_custom_call.1} parent=43 // pred_check
        %p373 = pneg %p120
      $region46: #{tpu_custom_call.1} parent=43 // pred_check_branch
        %375 = sbr.rel (%p373) target = $region48
      $region47: #{tpu_custom_call.1} parent=43 // pred_region
        %p376 = scmp.lt.s32.totalorder %s20, 1
        %s377 = scalar_select %p376, %s20, 1
        %s378 = smul.addr %s377, 4
        %s379 = smul.addr %s378, 8
        %s380 = scalar_lea.vmem %s3, %s379
      $region48: #{tpu_custom_call.1} parent=43 // pred_fallthru
        _
    $region44: #{tpu_custom_call.1} parent=5 // pred_fallthru
      _
  $region6: #{tpu_custom_call.1} parent=0 // loop_footer
    %s13 = sadd.s32 1, %s9
  $region7: #{tpu_custom_call.1} parent=0 // loop_footer_branch
    %8 = sbr.rel target = $region3
  $region8: #{tpu_custom_call.1} parent=0 // loop_exit
    _

</llo_original>
